<compile_context>
chip_gen: v5e
topology: v5e:2x2
jax: 0.10.0
libtpu: 0.0.40
codegen_flags: <defaults>
</compile_context>

<pallas_src>
import functools

import jax
import jax.numpy as jnp
from jax.experimental import pallas as pl
from jax.experimental.pallas import tpu as pltpu


def _round_up(x, m):
    return (x + m - 1) // m * m


def _vmem_limit_bytes():
    """Generation-aware VMEM budget (leave headroom below physical capacity)."""
    try:
        cap = pltpu.get_tpu_info().vmem_capacity_bytes
    except Exception:  # interpret mode / unusual runtimes
        cap = 64 * 1024 * 1024
    return int(min(cap * 3 // 4, 100 * 1024 * 1024))


def _const_spec(block_shape, index_map):
    """BlockSpec for blocks whose index map never changes over the grid:
    single-buffer them (no point double-buffering a block that is never
    re-fetched).  Falls back to the default spec if the running JAX version
    does not accept pipeline_mode."""
    try:
        return pl.BlockSpec(block_shape, index_map, pipeline_mode=pl.Buffered(1))
    except Exception:
        return pl.BlockSpec(block_shape, index_map)


def _propagate_kernel(*refs, tk, c_self, activation, has_dh, has_w, has_bias,
                      u_resident):
    """One (b, i, k) grid step of  acc += A_tile @ u_cols  (plus c_self * u_rows
    on the diagonal tile), with an optional fused finalize
        out = act(d_hat * acc @ W^T + b)
    on the last k step."""
    it = iter(refs)
    a_ref = next(it)                         # (1, TM, TK)          mm_dtype
    u_ref = next(it)                         # (1, TK | N_pad, F)   mm_dtype
    dh_ref = next(it) if has_dh else None    # (1, TM, 1)           f32
    wt_ref = next(it) if has_w else None     # (F, Fout_p)          mm_dtype
    b_ref = next(it) if has_bias else None   # (1, Fout_p)          f32
    o_ref = next(it)                         # (1, TM, Fout_p)
    acc_ref = next(it)                       # (TM, F)              f32 scratch

    i = pl.program_id(1)
    k = pl.program_id(2)

    @pl.when(k == 0)
    def _init():
        acc_ref[...] = jnp.zeros_like(acc_ref)

    if u_resident:
        start = pl.multiple_of(k * tk, 128)
        u_cols = u_ref[0, pl.ds(start, tk), :]
    else:
        u_cols = u_ref[0]

    # (TM, TK) @ (TK, F) on the MXU with f32 accumulation.
    acc_ref[...] += jnp.dot(a_ref[0], u_cols, preferred_element_type=jnp.float32)

    if c_self != 0.0:
        # Self-loop (A_hat = A + c*I) folded in: on the diagonal tile (k == i,
        # square tiles) the column slice of u is exactly this row tile's u.
        @pl.when(k == i)
        def _self_loop():
            acc_ref[...] += c_self * u_cols.astype(jnp.float32)

    @pl.when(k == pl.num_programs(2) - 1)
    def _finalize():
        y = acc_ref[...]
        if has_dh:
            y = dh_ref[0] * y                                  # row scale d_hat_i
        if has_w:
            y = jnp.dot(y.astype(wt_ref.dtype), wt_ref[...],
                        preferred_element_type=jnp.float32)     # (TM, Fout_p)
        if has_bias:
            y = y + b_ref[...]
        if activation is not None:
            y = jnp.maximum(y, 0.0) if activation == "relu" else activation(y)
        o_ref[0] = y.astype(o_ref.dtype)


def _propagate(A_pad, u_pad, *, dh=None, Wt=None, bias=None, c_self=0.0,
               activation=None, out_dtype, tm, tk, u_resident, vmem_limit):
    """Tiled  out = finalize(A_pad @ u_pad [+ c_self * u on the diagonal])."""
    assert tm == tk, "diagonal self-loop folding assumes square node tiles"
    B, N_pad, _ = A_pad.shape
    F_in = u_pad.shape[-1]
    F_out = Wt.shape[-1] if Wt is not None else F_in
    nm, nk = N_pad // tm, N_pad // tk

    in_specs = [pl.BlockSpec((1, tm, tk), lambda b, i, k: (b, i, k))]
    args = [A_pad]

    if u_resident:
        # Whole column operand stays resident per batch (DMA'd once per batch).
        in_specs.append(pl.BlockSpec((1, N_pad, F_in), lambda b, i, k: (b, 0, 0)))
    else:
        in_specs.append(pl.BlockSpec((1, tk, F_in), lambda b, i, k: (b, k, 0)))
    args.append(u_pad)

    if dh is not None:
        in_specs.append(pl.BlockSpec((1, tm, 1), lambda b, i, k: (b, i, 0)))
        args.append(dh)
    if Wt is not None:
        in_specs.append(_const_spec((F_in, F_out), lambda b, i, k: (0, 0)))
        args.append(Wt)
    if bias is not None:
        in_specs.append(_const_spec((1, F_out), lambda b, i, k: (0, 0)))
        args.append(bias)

    kernel = functools.partial(
        _propagate_kernel, tk=tk, c_self=c_self, activation=activation,
        has_dh=dh is not None, has_w=Wt is not None, has_bias=bias is not None,
        u_resident=u_resident)

    return pl.pallas_call(
        kernel,
        out_shape=jax.ShapeDtypeStruct((B, N_pad, F_out), out_dtype),
        grid_spec=pltpu.PrefetchScalarGridSpec(
            num_scalar_prefetch=0,
            grid=(B, nm, nk),
            in_specs=in_specs,
            out_specs=pl.BlockSpec((1, tm, F_out), lambda b, i, k: (b, i, 0)),
            scratch_shapes=[pltpu.VMEM((tm, F_in), jnp.float32)],
        ),
        compiler_params=pltpu.CompilerParams(
            dimension_semantics=("parallel", "parallel", "arbitrary"),
            vmem_limit_bytes=vmem_limit,
        ),
    )(*args)


def graph_conv(x, A, W, b, *, adj_sq=False, scale_identity=False,
               activation=None, compute_dtype=None, u_resident=None):
    """Pallas GraphConv forward.  Returns (out, A) like the PyTorch module.

    compute_dtype: optional low-precision MXU operand dtype (e.g. jnp.bfloat16)
      for the O(N^2) propagation; f32 accumulation is always kept.  Opt-in:
      ~0.5-1% relative error for 2-4x MXU throughput on v6e/v7x.
    """
    B, N, Fin = x.shape
    Fout, Fin_w = W.shape
    assert Fin_w == Fin
    assert A.shape == (B, N, N)
    assert b.shape == (Fout,)

    f32 = jnp.float32
    c_self = 2.0 if scale_identity else 1.0
    mm_dtype = jnp.dtype(compute_dtype) if compute_dtype is not None else jnp.dtype(f32)

    # --- degree / normalization: one read of A; for adj_sq the A^2 column
    #     sums come from the matvec (1^T A) @ A instead of materializing A@A.
    if adj_sq:
        s = jnp.sum(A, axis=1, dtype=f32)
        d = jnp.einsum("bn,bnm->bm", s, A.astype(f32)) + c_self
    else:
        d = jnp.sum(A, axis=1, dtype=f32) + c_self
    d_hat = (d + 1e-5) ** (-0.5)                                # (B, N) f32

    # --- padded / tiled sizes: lane-dense features; node tiles never below 256.
    Fin_p = _round_up(Fin, 128)
    Fout_p = _round_up(Fout, 128)
    if N <= 512:
        N_pad = _round_up(N, 128)
        tm = N_pad
    else:
        N_pad = _round_up(N, 256)
        tm = 512 if N_pad % 512 == 0 else 256
    tk = tm

    Wt = W.T.astype(f32)                                        # (Fin, Fout)

    # Matmul-order: contract the O(N^2) propagation against min(Fin, Fout).
    apply_w_in_kernel = Fin_p <= Fout_p
    if apply_w_in_kernel:
        z = x.astype(f32)                                       # propagate x, W inside kernel
        F_feat, F_p = Fin, Fin_p
    else:
        z = jnp.einsum("bnf,fo->bno", x.astype(f32), Wt)        # x @ W^T first
        F_feat, F_p = Fout, Fout_p

    # Zero padding keeps results exact; padded rows/cols are sliced off at the end.
    dh_pad = jnp.pad(d_hat, ((0, 0), (0, N_pad - N)))
    z_pad = jnp.pad(z, ((0, 0), (0, N_pad - N), (0, F_p - F_feat)))
    u = (dh_pad[:, :, None] * z_pad).astype(mm_dtype)           # column-scaled features
    dh3 = dh_pad[:, :, None]                                    # (B, N_pad, 1) f32
    # Single fused pad+cast pass over A (no f32 detour, no diagonal update:
    # the self-loop is folded inside the kernel on the diagonal tile).
    A_pad = jnp.pad(A, ((0, 0), (0, N_pad - N), (0, N_pad - N))).astype(mm_dtype)
    Wt_pad = jnp.pad(Wt, ((0, Fin_p - Fin), (0, Fout_p - Fout))).astype(mm_dtype)
    b_pad = jnp.pad(b.astype(f32), (0, Fout_p - Fout)).reshape(1, Fout_p)

    if u_resident is None:   # keep the whole column operand in VMEM when small
        u_resident = N_pad * F_p * jnp.dtype(mm_dtype).itemsize <= 8 * 1024 * 1024
    vmem_limit = _vmem_limit_bytes()
    common = dict(tm=tm, tk=tk, u_resident=u_resident, vmem_limit=vmem_limit)

    if not adj_sq:
        out_p = _propagate(
            A_pad, u, dh=dh3,
            Wt=Wt_pad if apply_w_in_kernel else None,            # never pass unused W^T
            bias=b_pad, c_self=c_self, activation=activation,
            out_dtype=x.dtype, **common)
        out = out_p[:, :N, :Fout]
    else:
        # A_hat = A@A + c*I, applied as two tiled passes; A@A is never formed.
        # TODO(synk): fuse the second pass's epilogue (self term, d_hat, W, bias,
        # activation) back into the kernel via an extra row-tile input.
        v = _propagate(A_pad, u, out_dtype=mm_dtype, **common)       # A @ u
        core = _propagate(A_pad, v, out_dtype=f32, **common)         # A @ (A @ u)
        y = (dh3 * (core + c_self * u.astype(f32)))[:, :N, :F_feat]
        if apply_w_in_kernel:                                        # W not applied yet
            out = jnp.einsum("bnf,of->bno", y, W.astype(f32)) + b.astype(f32)
        else:
            out = y + b.astype(f32)
        if activation is not None:
            out = jnp.maximum(out, 0.0) if activation == "relu" else activation(out)
        out = out.astype(x.dtype)

    return out, A


def _reference(x, A, W, b, *, adj_sq=False, scale_identity=False, activation=None):
    A_ = jnp.einsum("bij,bjk->bik", A, A) if adj_sq else A
    N = A.shape[1]
    I = jnp.eye(N, dtype=A.dtype)[None]
    if scale_identity:
        I = 2.0 * I
    A_hat = A_ + I
    D_hat = (jnp.sum(A_hat, axis=1) + 1e-5) ** (-0.5)
    L = D_hat[:, :, None] * A_hat * D_hat[:, None, :]
    y = jnp.einsum("bij,bjk->bik", L, x)
    out = jnp.einsum("bik,ok->bio", y, W) + b[None, None, :]
    if activation == "relu":
        out = jnp.maximum(out, 0.0)
    return out


if __name__ == "__main__":
    key = jax.random.PRNGKey(0)
    kx, ka, kw, kb = jax.random.split(key, 4)

    B, N, Fin, Fout = 2, 16, 8, 32

    x = jax.random.normal(kx, (B, N, Fin), dtype=jnp.float32)
    A_raw = jax.random.uniform(ka, (B, N, N), dtype=jnp.float32)
    A = (A_raw + jnp.swapaxes(A_raw, 1, 2)) * 0.5     # symmetric non-negative adjacency

    bound = 1.0 / (Fin ** 0.5)                        # nn.Linear default init range
    W = jax.random.uniform(kw, (Fout, Fin), dtype=jnp.float32, minval=-bound, maxval=bound)
    b = jax.random.uniform(kb, (Fout,), dtype=jnp.float32, minval=-bound, maxval=bound)

    # Default path (f32 operands, resident-u column operand).
    out, A_out = graph_conv(x, A, W, b)
    out = jax.block_until_ready(out)
    ref = _reference(x, A, W, b)
    assert out.shape == (B, N, Fout)
    assert jnp.allclose(out, ref, atol=1e-4, rtol=1e-4), "mismatch vs reference"

    # Extra tricks: scale_identity + relu (fused in the finalize).
    out2, _ = graph_conv(x, A, W, b, scale_identity=True, activation="relu")
    jax.block_until_ready(out2)
    ref2 = _reference(x, A, W, b, scale_identity=True, activation="relu")
    assert jnp.allclose(out2, ref2, atol=1e-4, rtol=1e-4), "mismatch (scale_identity/relu)"

    # adj_sq path: A applied twice, A@A never materialized.
    out3, _ = graph_conv(x, A, W, b, adj_sq=True)
    jax.block_until_ready(out3)
    ref3 = _reference(x, A, W, b, adj_sq=True)
    assert jnp.allclose(out3, ref3, atol=1e-4, rtol=1e-4), "mismatch (adj_sq)"

    # Tiled (non-resident) column-operand path.
    out4, _ = graph_conv(x, A, W, b, u_resident=False)
    jax.block_until_ready(out4)
    assert jnp.allclose(out4, ref, atol=1e-4, rtol=1e-4), "mismatch (tiled u)"

    # Opt-in low-precision MXU operands (f32 accumulation kept) — looser tolerance.
    out5, _ = graph_conv(x, A, W, b, compute_dtype=jnp.bfloat16)
    jax.block_until_ready(out5)
    assert jnp.allclose(out5, ref, atol=5e-2, rtol=5e-2), "mismatch (bf16 operands)"

    print("KERNEL_OK")
</pallas_src>

<mosaic_0001>
module attributes {stable_mosaic.version = 11 : i64} {
  func.func @_propagate_kernel(%arg0: i32, %arg1: i32, %arg2: i32, %arg3: memref<1x128x128xf32, #tpu.memory_space<vmem>>, %arg4: memref<1x128x128xf32, #tpu.memory_space<vmem>>, %arg5: memref<1x128x1xf32, #tpu.memory_space<vmem>>, %arg6: memref<128x128xf32, #tpu.memory_space<vmem>>, %arg7: memref<1x128xf32, #tpu.memory_space<vmem>>, %arg8: memref<1x128x128xf32, #tpu.memory_space<vmem>>, %arg9: memref<128x128xf32, #tpu.memory_space<vmem>>) attributes {dimension_semantics = [#tpu.dimension_semantics<parallel>, #tpu.dimension_semantics<parallel>, #tpu.dimension_semantics<arbitrary>], iteration_bounds = array<i64: 2, 1, 1>, scalar_prefetch = 0 : i64, scratch_operands = 1 : i64, tpu.core_type = #tpu.core_type<tc>, window_params = [{transform_indices = @transform_0, window_bounds = array<i64: 1, 128, 128>}, {transform_indices = @transform_1, window_bounds = array<i64: 1, 128, 128>}, {transform_indices = @transform_2, window_bounds = array<i64: 1, 128, 1>}, {pipeline_mode = #tpu.pipeline_mode<synchronous>, transform_indices = @transform_3, window_bounds = array<i64: 128, 128>}, {pipeline_mode = #tpu.pipeline_mode<synchronous>, transform_indices = @transform_4, window_bounds = array<i64: 1, 128>}, {transform_indices = @transform_5, window_bounds = array<i64: 1, 128, 128>}]} {
    %c0_i32 = arith.constant 0 : i32
    %0 = arith.cmpi eq, %arg2, %c0_i32 : i32
    %1 = arith.extui %0 : i1 to i32
    %c0_i32_0 = arith.constant 0 : i32
    %2 = arith.cmpi ne, %1, %c0_i32_0 : i32
    scf.if %2 {
      %cst_12 = arith.constant 0.000000e+00 : f32
      %20 = vector.broadcast %cst_12 : f32 to vector<128x128xf32>
      %c0_13 = arith.constant 0 : index
      %c0_14 = arith.constant 0 : index
      %21 = vector.load %arg9[%c0_13, %c0_14] : memref<128x128xf32, #tpu.memory_space<vmem>>, vector<128x128xf32>
      tpu.vector_store %arg9[%c0_13, %c0_14], %20 {strides = array<i32>} : memref<128x128xf32, #tpu.memory_space<vmem>>, vector<128x128xf32>,
    } else {
    }
    %c128_i32 = arith.constant 128 : i32
    %3 = arith.muli %arg2, %c128_i32 : i32
    %4 = tpu.assume_multiple %3, 128 : i32
    %c0 = arith.constant 0 : index
    %5 = arith.index_cast %4 : i32 to index
    %c0_1 = arith.constant 0 : index
    %6 = vector.load %arg4[%c0, %5, %c0_1] : memref<1x128x128xf32, #tpu.memory_space<vmem>>, vector<1x128x128xf32>
    %7 = vector.shape_cast %6 : vector<1x128x128xf32> to vector<128x128xf32>
    %c0_2 = arith.constant 0 : index
    %c0_3 = arith.constant 0 : index
    %8 = vector.load %arg9[%c0_2, %c0_3] : memref<128x128xf32, #tpu.memory_space<vmem>>, vector<128x128xf32>
    %c0_4 = arith.constant 0 : index
    %c0_5 = arith.constant 0 : index
    %c0_6 = arith.constant 0 : index
    %9 = vector.load %arg3[%c0_4, %c0_5, %c0_6] : memref<1x128x128xf32, #tpu.memory_space<vmem>>, vector<1x128x128xf32>
    %10 = vector.shape_cast %9 : vector<1x128x128xf32> to vector<128x128xf32>
    %cst = arith.constant dense<0.000000e+00> : vector<128x128xf32>
    %11 = tpu.matmul %10, %7, %cst {dimension_numbers = #tpu.dot_dimension_numbers<[1], [0], [0], [1], [0, 0, 1, 1], [], []>} : vector<128x128xf32>, vector<128x128xf32>, vector<128x128xf32> -> vector<128x128xf32>
    %12 = arith.addf %8, %11 : vector<128x128xf32>
    %c0_7 = arith.constant 0 : index
    %c0_8 = arith.constant 0 : index
    %13 = vector.load %arg9[%c0_7, %c0_8] : memref<128x128xf32, #tpu.memory_space<vmem>>, vector<128x128xf32>
    tpu.vector_store %arg9[%c0_7, %c0_8], %12 {strides = array<i32>} : memref<128x128xf32, #tpu.memory_space<vmem>>, vector<128x128xf32>,
    %14 = arith.cmpi eq, %arg2, %arg1 : i32
    %15 = arith.extui %14 : i1 to i32
    %c0_i32_9 = arith.constant 0 : i32
    %16 = arith.cmpi ne, %15, %c0_i32_9 : i32
    scf.if %16 {
      %c0_12 = arith.constant 0 : index
      %c0_13 = arith.constant 0 : index
      %20 = vector.load %arg9[%c0_12, %c0_13] : memref<128x128xf32, #tpu.memory_space<vmem>>, vector<128x128xf32>
      %cst_14 = arith.constant 1.000000e+00 : f32
      %21 = vector.broadcast %cst_14 : f32 to vector<128x128xf32>
      %22 = arith.mulf %21, %7 : vector<128x128xf32>
      %23 = arith.addf %20, %22 : vector<128x128xf32>
      %c0_15 = arith.constant 0 : index
      %c0_16 = arith.constant 0 : index
      %24 = vector.load %arg9[%c0_15, %c0_16] : memref<128x128xf32, #tpu.memory_space<vmem>>, vector<128x128xf32>
      tpu.vector_store %arg9[%c0_15, %c0_16], %23 {strides = array<i32>} : memref<128x128xf32, #tpu.memory_space<vmem>>, vector<128x128xf32>,
    } else {
    }
    %c0_i32_10 = arith.constant 0 : i32
    %17 = arith.cmpi eq, %arg2, %c0_i32_10 : i32
    %18 = arith.extui %17 : i1 to i32
    %c0_i32_11 = arith.constant 0 : i32
    %19 = arith.cmpi ne, %18, %c0_i32_11 : i32
    scf.if %19 {
      %c0_12 = arith.constant 0 : index
      %c0_13 = arith.constant 0 : index
      %20 = vector.load %arg9[%c0_12, %c0_13] : memref<128x128xf32, #tpu.memory_space<vmem>>, vector<128x128xf32>
      %c0_14 = arith.constant 0 : index
      %c0_15 = arith.constant 0 : index
      %c0_16 = arith.constant 0 : index
      %21 = vector.load %arg5[%c0_14, %c0_15, %c0_16] : memref<1x128x1xf32, #tpu.memory_space<vmem>>, vector<1x128x1xf32>
      %22 = vector.shape_cast %21 : vector<1x128x1xf32> to vector<128x1xf32>
      %23 = vector.broadcast %22 : vector<128x1xf32> to vector<128x128xf32>
      %24 = arith.mulf %23, %20 : vector<128x128xf32>
      %c0_17 = arith.constant 0 : index
      %c0_18 = arith.constant 0 : index
      %25 = vector.load %arg6[%c0_17, %c0_18] : memref<128x128xf32, #tpu.memory_space<vmem>>, vector<128x128xf32>
      %cst_19 = arith.constant dense<0.000000e+00> : vector<128x128xf32>
      %26 = tpu.matmul %24, %25, %cst_19 {dimension_numbers = #tpu.dot_dimension_numbers<[1], [0], [0], [1], [0, 0, 1, 1], [], []>} : vector<128x128xf32>, vector<128x128xf32>, vector<128x128xf32> -> vector<128x128xf32>
      %c0_20 = arith.constant 0 : index
      %c0_21 = arith.constant 0 : index
      %27 = vector.load %arg7[%c0_20, %c0_21] : memref<1x128xf32, #tpu.memory_space<vmem>>, vector<1x128xf32>
      %28 = vector.broadcast %27 : vector<1x128xf32> to vector<128x128xf32>
      %29 = arith.addf %26, %28 : vector<128x128xf32>
      %c0_22 = arith.constant 0 : index
      %c0_23 = arith.constant 0 : index
      %c0_24 = arith.constant 0 : index
      %30 = vector.load %arg8[%c0_22, %c0_23, %c0_24] : memref<1x128x128xf32, #tpu.memory_space<vmem>>, vector<1x128x128xf32>
      %31 = vector.shape_cast %30 : vector<1x128x128xf32> to vector<128x128xf32>
      %32 = vector.shape_cast %29 : vector<128x128xf32> to vector<1x128x128xf32>
      tpu.vector_store %arg8[%c0_22, %c0_23, %c0_24], %32 {strides = array<i32>} : memref<1x128x128xf32, #tpu.memory_space<vmem>>, vector<1x128x128xf32>,
    } else {
    }
    return
  }
  func.func @transform_0(%arg0: i32, %arg1: i32, %arg2: i32) -> (i32, i32, i32) {
    %c0_i32 = arith.constant 0 : i32
    return %arg0, %arg1, %arg2 : i32, i32, i32
  }
  func.func @transform_1(%arg0: i32, %arg1: i32, %arg2: i32) -> (i32, i32, i32) {
    %c0_i32 = arith.constant 0 : i32
    %c0_i32_0 = arith.constant 0 : i32
    %c0_i32_1 = arith.constant 0 : i32
    return %arg0, %c0_i32, %c0_i32_0 : i32, i32, i32
  }
  func.func @transform_2(%arg0: i32, %arg1: i32, %arg2: i32) -> (i32, i32, i32) {
    %c0_i32 = arith.constant 0 : i32
    %c0_i32_0 = arith.constant 0 : i32
    return %arg0, %arg1, %c0_i32 : i32, i32, i32
  }
  func.func @transform_3(%arg0: i32, %arg1: i32, %arg2: i32) -> (i32, i32) {
    %c0_i32 = arith.constant 0 : i32
    %c0_i32_0 = arith.constant 0 : i32
    %c0_i32_1 = arith.constant 0 : i32
    return %c0_i32, %c0_i32_0 : i32, i32
  }
  func.func @transform_4(%arg0: i32, %arg1: i32, %arg2: i32) -> (i32, i32) {
    %c0_i32 = arith.constant 0 : i32
    %c0_i32_0 = arith.constant 0 : i32
    %c0_i32_1 = arith.constant 0 : i32
    return %c0_i32, %c0_i32_0 : i32, i32
  }
  func.func @transform_5(%arg0: i32, %arg1: i32, %arg2: i32) -> (i32, i32, i32) {
    %c0_i32 = arith.constant 0 : i32
    %c0_i32_0 = arith.constant 0 : i32
    return %arg0, %arg1, %c0_i32 : i32, i32, i32
  }
}

</mosaic_0001>

<llo_original>
// kernel: tpu_custom_call.1
$region0: #{tpu_custom_call.1}
  #allocation0 [shape = 'u32[]', space=smem, size = 0x4, offset = 0x4, fixed_abs, tag = 'smem constant byte address 0x4 - core index']
  #allocation1 [shape = 'u32[72,128]{1,0:T(1,128)}', space=vmem, size = 0x9000, scoped, tag = 'internal scratch']
  #allocation2 [shape = 'f32[128,128]{1,0:T(8,128)}', space=vmem, size = 0x10000, scoped, tag = 'scratch operand']
  %s0 = inlined_call_operand.vmem [shape: f32[2,128,128], index: 0, kind: input, shape index: {}]
  %s1 = inlined_call_operand.hbm [shape: f32[2,128,128], index: 1, kind: input, shape index: {}]
  %s2 = inlined_call_operand.vmem [shape: f32[2,128,1], index: 2, kind: input, shape index: {}]
  %s3 = inlined_call_operand.hbm [shape: f32[128,128], index: 3, kind: input, shape index: {}]
  %s4 = inlined_call_operand.vmem [shape: f32[1,128], index: 4, kind: input, shape index: {}]
  %s5 = inlined_call_operand.hbm [shape: f32[2,128,128], index: 5, kind: output, shape index: {}]
  %s6 = sld [smem:[#allocation0]]
  $region73: #{tpu_custom_call.1} parent=0
    _
  %s8 = ssub.s32 1, %s6
  %s9 = scalar_select 0, %s8, %s6
  $region1: #{tpu_custom_call.1} parent=0
    #allocation3 [shape = 'u8[131072]{0}', space=vmem, size = 0x20000, scoped, tag = 'input window, operand 1']
    #allocation4 [shape = 's32[2]{0}', space=sflag, size = 0x8, scoped, tag = 'scoped memory for tpu_custom_call.1']
    #allocation5 [shape = 's32[2]{0}', space=sflag, size = 0x8, scoped, tag = 'scoped memory for tpu_custom_call.1']
    #allocation6 [shape = 'u8[65536]{0}', space=vmem, size = 0x10000, scoped, tag = 'input window, operand 3, single buffered']
    #allocation7 [shape = 's32[1]{0}', space=sflag, size = 0x4, scoped, tag = 'scoped memory for tpu_custom_call.1']
    #allocation8 [shape = 'u8[131072]{0}', space=vmem, size = 0x20000, scoped, tag = 'output window, operand 0']
    %10 = vsyncpa [#allocation4], 0
    %s11 = scalar_lea.sflag [#allocation4], 1
    %12 = vsyncpa %s11, 0
    %13 = vsyncpa [#allocation7], 0
    %14 = vsyncpa [#allocation5], 0
    %s15 = scalar_lea.sflag [#allocation5], 1
    %16 = vsyncpa %s15, 0
    loop: start=0, step=1, limit=4
    $region2: #{tpu_custom_call.1} parent=1 // loop_pre_header
      _
    $region3: #{tpu_custom_call.1} parent=1 // loop_header
      %s18 = sphi 0, %s22
      %p19 = scmp.ge.s32.totalorder %s18, 4
      %s25 = sphi 0, %s44
      %s26 = sphi 0, %s40
      %s27 = sphi 0, %s36
      %s28 = sphi 0, %s25
      %s29 = sphi 0, %s26
      %s30 = sphi 0, %s27
      %s31 = sphi 0, %s28
      %s32 = sphi 0, %s29
      %s33 = sphi 0, %s30
      %s51 = sphi 0, %s53
      %s54 = sphi 0, %s51
      %s55 = sphi 0, %s54
      %s71 = sphi 0, %s55
      %s77 = sphi 0, %s79
      %s80 = sphi 0, %s77
      %s81 = sphi 0, %s80
      %s97 = sphi 0, %s81
      %s105 = sphi 0, %s107
      %s108 = sphi 0, %s105
      %s109 = sphi 0, %s108
      %s125 = sphi 0, %s109
      %s129 = sphi 0, %s129
      %s131 = sphi 0, %s129
      %s132 = sphi 0, %s131
      %s146 = sphi 0, %s132
      %s150 = sphi 0, %s150
      %s152 = sphi 0, %s150
      %s153 = sphi 0, %s152
      %s167 = sphi 0, %s153
      %s175 = sphi 0, %s177
      %s178 = sphi 0, %s175
      %s179 = sphi 0, %s178
      %s195 = sphi 0, %s179
    $region4: #{tpu_custom_call.1} parent=1 // loop_header_branch
      %21 = sbr.rel (%p19) target = $region8
    $region5: #{tpu_custom_call.1} parent=1 // loop_body
      %s23 = ssub.s32 %s18, 1
      %s24 = ssub.s32 %s18, 2
      %s34 = sadd.s32 1, %s27
      %p35 = scmp.ge.s32.totalorder %s34, 1
      %s36 = scalar_select %p35, 0, %s34
      %s37 = sadd.s32 1, %s26
      %s38 = scalar_select %p35, %s37, %s26
      %p39 = scmp.ge.s32.totalorder %s38, 1
      %s40 = scalar_select %p39, 0, %s38
      %s41 = sadd.s32 1, %s25
      %s42 = scalar_select %p39, %s41, %s25
      %p43 = scmp.ge.s32.totalorder %s42, 2
      %s44 = scalar_select %p43, 0, %s42
      %s45 = ssub.s32 %s25, %s44
      %s46 = ssub.s32 %s26, %s40
      %s47 = sor.u32 %s45, %s46
      %s48 = ssub.s32 %s27, %s36
      %s49 = sor.u32 %s47, %s48
      %p50 = scmp.eq.s32.totalorder %s49, 0
      %s52 = sadd.s32 %s51, 1
      %s53 = scalar_select %p50, %s51, %s52
      %p56 = pneg %p50
      %p57 = scmp.eq.s32.totalorder %s18, 1
      %p58 = por %p56, %p57
      %p59 = scmp.ne.s32.totalorder %s51, %s54
      %p60 = scmp.eq.s32.totalorder %s18, 0
      %p61 = por %p59, %p60
      %p62 = scmp.ne.s32.totalorder %s51, %s54
      %p63 = scmp.eq.s32.totalorder %s23, 1
      %p64 = por %p62, %p63
      %p65 = scmp.ne.s32.totalorder %s54, %s55
      %p66 = scmp.eq.s32.totalorder %s23, 0
      %p67 = por %p65, %p66
      %p68 = scmp.ne.s32.totalorder %s54, %s55
      %p69 = scmp.eq.s32.totalorder %s24, 1
      %p70 = por %p68, %p69
      %p72 = scmp.ne.s32.totalorder %s55, %s71
      %p73 = scmp.eq.s32.totalorder %s24, 0
      %p74 = por %p72, %p73
      %s75 = ssub.s32 %s25, %s44
      %p76 = scmp.eq.s32.totalorder %s75, 0
      %s78 = sadd.s32 %s77, 1
      %s79 = scalar_select %p76, %s77, %s78
      %p82 = pneg %p76
      %p83 = scmp.eq.s32.totalorder %s18, 1
      %p84 = por %p82, %p83
      %p85 = scmp.ne.s32.totalorder %s77, %s80
      %p86 = scmp.eq.s32.totalorder %s18, 0
      %p87 = por %p85, %p86
      %p88 = scmp.ne.s32.totalorder %s77, %s80
      %p89 = scmp.eq.s32.totalorder %s23, 1
      %p90 = por %p88, %p89
      %p91 = scmp.ne.s32.totalorder %s80, %s81
      %p92 = scmp.eq.s32.totalorder %s23, 0
      %p93 = por %p91, %p92
      %p94 = scmp.ne.s32.totalorder %s80, %s81
      %p95 = scmp.eq.s32.totalorder %s24, 1
      %p96 = por %p94, %p95
      %p98 = scmp.ne.s32.totalorder %s81, %s97
      %p99 = scmp.eq.s32.totalorder %s24, 0
      %p100 = por %p98, %p99
      %s101 = ssub.s32 %s25, %s44
      %s102 = ssub.s32 %s26, %s40
      %s103 = sor.u32 %s101, %s102
      %p104 = scmp.eq.s32.totalorder %s103, 0
      %s106 = sadd.s32 %s105, 1
      %s107 = scalar_select %p104, %s105, %s106
      %p110 = pneg %p104
      %p111 = scmp.eq.s32.totalorder %s18, 1
      %p112 = por %p110, %p111
      %p113 = scmp.ne.s32.totalorder %s105, %s108
      %p114 = scmp.eq.s32.totalorder %s18, 0
      %p115 = por %p113, %p114
      %p116 = scmp.ne.s32.totalorder %s105, %s108
      %p117 = scmp.eq.s32.totalorder %s23, 1
      %p118 = por %p116, %p117
      %p119 = scmp.ne.s32.totalorder %s108, %s109
      %p120 = scmp.eq.s32.totalorder %s23, 0
      %p121 = por %p119, %p120
      %p122 = scmp.ne.s32.totalorder %s108, %s109
      %p123 = scmp.eq.s32.totalorder %s24, 1
      %p124 = por %p122, %p123
      %p126 = scmp.ne.s32.totalorder %s109, %s125
      %p127 = scmp.eq.s32.totalorder %s24, 0
      %p128 = por %p126, %p127
      %s130 = sadd.s32 %s129, 1
      %p133 = scmp.eq.s32.totalorder %s18, 1
      %p134 = scmp.ne.s32.totalorder %s129, %s131
      %p135 = scmp.eq.s32.totalorder %s18, 0
      %p136 = por %p134, %p135
      %p137 = scmp.ne.s32.totalorder %s129, %s131
      %p138 = scmp.eq.s32.totalorder %s23, 1
      %p139 = por %p137, %p138
      %p140 = scmp.ne.s32.totalorder %s131, %s132
      %p141 = scmp.eq.s32.totalorder %s23, 0
      %p142 = por %p140, %p141
      %p143 = scmp.ne.s32.totalorder %s131, %s132
      %p144 = scmp.eq.s32.totalorder %s24, 1
      %p145 = por %p143, %p144
      %p147 = scmp.ne.s32.totalorder %s132, %s146
      %p148 = scmp.eq.s32.totalorder %s24, 0
      %p149 = por %p147, %p148
      %s151 = sadd.s32 %s150, 1
      %p154 = scmp.eq.s32.totalorder %s18, 1
      %p155 = scmp.ne.s32.totalorder %s150, %s152
      %p156 = scmp.eq.s32.totalorder %s18, 0
      %p157 = por %p155, %p156
      %p158 = scmp.ne.s32.totalorder %s150, %s152
      %p159 = scmp.eq.s32.totalorder %s23, 1
      %p160 = por %p158, %p159
      %p161 = scmp.ne.s32.totalorder %s152, %s153
      %p162 = scmp.eq.s32.totalorder %s23, 0
      %p163 = por %p161, %p162
      %p164 = scmp.ne.s32.totalorder %s152, %s153
      %p165 = scmp.eq.s32.totalorder %s24, 1
      %p166 = por %p164, %p165
      %p168 = scmp.ne.s32.totalorder %s153, %s167
      %p169 = scmp.eq.s32.totalorder %s24, 0
      %p170 = por %p168, %p169
      %s171 = ssub.s32 %s25, %s44
      %s172 = ssub.s32 %s26, %s40
      %s173 = sor.u32 %s171, %s172
      %p174 = scmp.eq.s32.totalorder %s173, 0
      %s176 = sadd.s32 %s175, 1
      %s177 = scalar_select %p174, %s175, %s176
      %p180 = pneg %p174
      %p181 = scmp.eq.s32.totalorder %s18, 1
      %p182 = por %p180, %p181
      %p183 = scmp.ne.s32.totalorder %s175, %s178
      %p184 = scmp.eq.s32.totalorder %s18, 0
      %p185 = por %p183, %p184
      %p186 = scmp.ne.s32.totalorder %s175, %s178
      %p187 = scmp.eq.s32.totalorder %s23, 1
      %p188 = por %p186, %p187
      %p189 = scmp.ne.s32.totalorder %s178, %s179
      %p190 = scmp.eq.s32.totalorder %s23, 0
      %p191 = por %p189, %p190
      %p192 = scmp.ne.s32.totalorder %s178, %s179
      %p193 = scmp.eq.s32.totalorder %s24, 1
      %p194 = por %p192, %p193
      %p196 = scmp.ne.s32.totalorder %s179, %s195
      %p197 = scmp.eq.s32.totalorder %s24, 0
      %p198 = por %p196, %p197
      %p199 = scmp.le.s32.totalorder 1, %s18
      %p200 = scmp.lt.s32.totalorder %s18, 3
      %p201 = pnand %p199, %p200
      %p202 = pneg %p201
      // Predicated region
      $region9: #{tpu_custom_call.1} parent=5 // pred_check
        _
      $region10: #{tpu_custom_call.1} parent=5 // pred_check_branch
        %204 = sbr.rel (%p201) target = $region12
      $region11: #{tpu_custom_call.1} parent=5 // pred_region
        %s205 = ssub.s32 %s18, 1
        // Predicated region
        $region13: #{tpu_custom_call.1} parent=11 // pred_check
          %p206 = pneg %p142
        $region14: #{tpu_custom_call.1} parent=11 // pred_check_branch
          %208 = sbr.rel (%p206) target = $region16
        $region15: #{tpu_custom_call.1} parent=11 // pred_region
          %210 = vsyncadd [#allocation7], 0
          %s211 = sshll.u32 %s3, 4
          %s212 = int_to_ptr.hbm [resolvable:$true] %s211
          %s213 = sshll.u32 [#allocation6], 4
          %s214 = int_to_ptr.vmem [resolvable:$true] %s213
          %219 = dma.hbm_to_vmem [thread:$0]  %s212, 2048, %s214, [#allocation7], 128, 128, 8
        $region16: #{tpu_custom_call.1} parent=11 // pred_fallthru
          _
        // Predicated region
        $region17: #{tpu_custom_call.1} parent=11 // pred_check
          %p220 = pneg %p163
        $region18: #{tpu_custom_call.1} parent=11 // pred_check_branch
          %222 = sbr.rel (%p220) target = $region20
        $region19: #{tpu_custom_call.1} parent=11 // pred_region
          _
        $region20: #{tpu_custom_call.1} parent=11 // pred_fallthru
          _
      $region12: #{tpu_custom_call.1} parent=5 // pred_fallthru
        _
      %p223 = scmp.lt.s32.totalorder %s18, 2
      // Predicated region
      $region21: #{tpu_custom_call.1} parent=5 // pred_check
        %p224 = pneg %p223
      $region22: #{tpu_custom_call.1} parent=5 // pred_check_branch
        %226 = sbr.rel (%p224) target = $region24
      $region23: #{tpu_custom_call.1} parent=5 // pred_region
        // Predicated region
        $region25: #{tpu_custom_call.1} parent=23 // pred_check
          %p227 = pneg %p61
        $region26: #{tpu_custom_call.1} parent=23 // pred_check_branch
          %229 = sbr.rel (%p227) target = $region28
        $region27: #{tpu_custom_call.1} parent=23 // pred_region
          %s230 = smul.u32 16, %s26
          %p231 = scmp.lt.s32.totalorder %s25, 1
          %s232 = scalar_select %p231, %s25, 1
          %p233 = scmp.lt.s32.totalorder %s230, 15
          %s234 = scalar_select %p233, %s230, 15
          %p235 = scmp.lt.s32.totalorder %s27, 0
          %s236 = scalar_select %p235, %s27, 0
          %s237 = sadd.s32 %s236, %s234
          %s238 = smul.addr %s232, 16
          %s239 = sadd.s32 %s237, %s238
          %s240 = smul.addr %s239, 8
          %s241 = scalar_lea.vmem %s0, %s240
          %s242 = smul.u32 16, %s26
        $region28: #{tpu_custom_call.1} parent=23 // pred_fallthru
          _
        // Predicated region
        $region29: #{tpu_custom_call.1} parent=23 // pred_check
          %p243 = pneg %p87
        $region30: #{tpu_custom_call.1} parent=23 // pred_check_branch
          %245 = sbr.rel (%p243) target = $region32
        $region31: #{tpu_custom_call.1} parent=23 // pred_region
          %s246 = sand.u32 %s77, 1
          %s247 = scalar_lea.sflag [#allocation4], %s246
          %s248 = sand.u32 %s77, 1
          %s249 = smul.addr %s248, 128
          %s250 = scalar_lea.vmem [#allocation3], %s249
          %252 = vsyncadd %s247, 0
          %s253 = smul.addr %s25, 16
          %s254 = smul.addr %s253, 8
          %s255 = scalar_lea.hbm %s1, %s254
          %s256 = sshll.u32 %s255, 4
          %s257 = int_to_ptr.hbm [resolvable:$true] %s256
          %s258 = sshll.u32 %s250, 4
          %s259 = int_to_ptr.vmem [resolvable:$true] %s258
          %264 = dma.hbm_to_vmem [thread:$0]  %s257, 2048, %s259, %s247, 128, 128, 8
        $region32: #{tpu_custom_call.1} parent=23 // pred_fallthru
          _
        // Predicated region
        $region33: #{tpu_custom_call.1} parent=23 // pred_check
          %p265 = pneg %p115
        $region34: #{tpu_custom_call.1} parent=23 // pred_check_branch
          %267 = sbr.rel (%p265) target = $region36
        $region35: #{tpu_custom_call.1} parent=23 // pred_region
          %s268 = smul.u32 16, %s26
          %p269 = scmp.lt.s32.totalorder %s25, 1
          %s270 = scalar_select %p269, %s25, 1
          %p271 = scmp.lt.s32.totalorder %s268, 15
          %s272 = scalar_select %p271, %s268, 15
          %s273 = smul.addr %s270, 16
          %s274 = sadd.s32 %s272, %s273
          %s275 = smul.addr %s274, 8
          %s276 = scalar_lea.vmem %s2, %s275
          %s277 = smul.u32 16, %s26
        $region36: #{tpu_custom_call.1} parent=23 // pred_fallthru
          _
      $region24: #{tpu_custom_call.1} parent=5 // pred_fallthru
        _
      %p278 = scmp.le.s32.totalorder 1, %s18
      %p279 = scmp.lt.s32.totalorder %s18, 3
      %p280 = pnand %p278, %p279
      %p281 = pneg %p280
      // Predicated region
      $region37: #{tpu_custom_call.1} parent=5 // pred_check
        _
      $region38: #{tpu_custom_call.1} parent=5 // pred_check_branch
        %283 = sbr.rel (%p280) target = $region40
      $region39: #{tpu_custom_call.1} parent=5 // pred_region
        %s284 = ssub.s32 %s18, 1
        %s285 = sand.u32 %s80, 1
        %s286 = scalar_lea.sflag [#allocation4], %s285
        %s287 = sand.u32 %s80, 1
        %s288 = smul.addr %s287, 128
        %s289 = scalar_lea.vmem [#allocation3], %s288
        // Predicated region
        $region41: #{tpu_custom_call.1} parent=39 // pred_check
          %p290 = pneg %p93
        $region42: #{tpu_custom_call.1} parent=39 // pred_check_branch
          %292 = sbr.rel (%p290) target = $region44
        $region43: #{tpu_custom_call.1} parent=39 // pred_region
          %294 = dma.done %s286, 2048
        $region44: #{tpu_custom_call.1} parent=39 // pred_fallthru
          _
        // Predicated region
        $region45: #{tpu_custom_call.1} parent=39 // pred_check
          %p295 = pneg %p142
        $region46: #{tpu_custom_call.1} parent=39 // pred_check_branch
          %297 = sbr.rel (%p295) target = $region48
        $region47: #{tpu_custom_call.1} parent=39 // pred_region
          %299 = dma.done [#allocation7], 2048
        $region48: #{tpu_custom_call.1} parent=39 // pred_fallthru
          _
        %s300 = smul.u32 16, %s29
        %p301 = scmp.lt.s32.totalorder %s28, 1
        %s302 = scalar_select %p301, %s28, 1
        %p303 = scmp.lt.s32.totalorder %s300, 15
        %s304 = scalar_select %p303, %s300, 15
        %p305 = scmp.lt.s32.totalorder %s30, 0
        %s306 = scalar_select %p305, %s30, 0
        %s307 = sadd.s32 %s306, %s304
        %s308 = smul.addr %s302, 16
        %s309 = sadd.s32 %s307, %s308
        %s310 = smul.addr %s309, 8
        %s311 = scalar_lea.vmem %s0, %s310
        %p312 = pneg %p67
        %p313 = pneg %p64
        %s314 = sand.u32 %s80, 1
        %s315 = scalar_lea.sflag [#allocation4], %s314
        %s316 = sand.u32 %s80, 1
        %s317 = smul.addr %s316, 128
        %s318 = scalar_lea.vmem [#allocation3], %s317
        %p319 = pneg %p93
        %p320 = pneg %p90
        %s321 = smul.u32 16, %s29
        %p322 = scmp.lt.s32.totalorder %s28, 1
        %s323 = scalar_select %p322, %s28, 1
        %p324 = scmp.lt.s32.totalorder %s321, 15
        %s325 = scalar_select %p324, %s321, 15
        %s326 = smul.addr %s323, 16
        %s327 = sadd.s32 %s325, %s326
        %s328 = smul.addr %s327, 8
        %s329 = scalar_lea.vmem %s2, %s328
        %p330 = pneg %p121
        %p331 = pneg %p118
        %p332 = pneg %p142
        %p333 = pneg %p139
        %p334 = pneg %p163
        %p335 = pneg %p160
        %p336 = pneg %p191
        %p337 = pneg %p188
        %s338 = sand.u32 %s178, 1
        %s339 = scalar_lea.sflag [#allocation5], %s338
        %s340 = sand.u32 %s178, 1
        %s341 = smul.addr %s340, 128
        %s342 = scalar_lea.vmem [#allocation8], %s341
        %s343 = smul.u32 16, %s29
        %p344 = scmp.lt.s32.totalorder %s28, 1
        %s345 = scalar_select %p344, %s28, 1
        %p346 = scmp.lt.s32.totalorder %s343, 15
        %s347 = scalar_select %p346, %s343, 15
        %p348 = scmp.lt.s32.totalorder %s30, 0
        %s349 = scalar_select %p348, %s30, 0
        %s350 = sadd.s32 %s349, %s347
        %s351 = smul.addr %s345, 16
        %s352 = sadd.s32 %s350, %s351
        %s353 = smul.addr %s352, 8
        %s354 = scalar_lea.vmem %s0, %s353
        %s355 = smul.u32 16, %s29
        %s356 = smul.u32 16, %s29
        %p357 = scmp.lt.s32.totalorder %s28, 1
        %s358 = scalar_select %p357, %s28, 1
        %p359 = scmp.lt.s32.totalorder %s356, 15
        %s360 = scalar_select %p359, %s356, 15
        %s361 = smul.addr %s358, 16
        %s362 = sadd.s32 %s360, %s361
        %s363 = smul.addr %s362, 8
        %s364 = scalar_lea.vmem %s2, %s363
        %s365 = smul.u32 16, %s29
        %s366 = smul.u32 16, %s29
        %p367 = scmp.eq.s32.totalorder %s30, 0
        // Predicated region
        $region49: #{tpu_custom_call.1} parent=39 // pred_check
          %p368 = pneg %p367
        $region50: #{tpu_custom_call.1} parent=39 // pred_check_branch
          %370 = sbr.rel (%p368) target = $region52
        $region51: #{tpu_custom_call.1} parent=39 // pred_region
          %371 = vst [vmem:[#allocation2] sm:$0xff] 0.0
          %372 = vst [vmem:[#allocation2 + $0x8] sm:$0xff] 0.0
          %373 = vst [vmem:[#allocation2 + $0x10] sm:$0xff] 0.0
          %374 = vst [vmem:[#allocation2 + $0x18] sm:$0xff] 0.0
          %375 = vst [vmem:[#allocation2 + $0x20] sm:$0xff] 0.0
          %376 = vst [vmem:[#allocation2 + $0x28] sm:$0xff] 0.0
          %377 = vst [vmem:[#allocation2 + $0x30] sm:$0xff] 0.0
          %378 = vst [vmem:[#allocation2 + $0x38] sm:$0xff] 0.0
          %379 = vst [vmem:[#allocation2 + $0x40] sm:$0xff] 0.0
          %380 = vst [vmem:[#allocation2 + $0x48] sm:$0xff] 0.0
          %381 = vst [vmem:[#allocation2 + $0x50] sm:$0xff] 0.0
          %382 = vst [vmem:[#allocation2 + $0x58] sm:$0xff] 0.0
          %383 = vst [vmem:[#allocation2 + $0x60] sm:$0xff] 0.0
          %384 = vst [vmem:[#allocation2 + $0x68] sm:$0xff] 0.0
          %385 = vst [vmem:[#allocation2 + $0x70] sm:$0xff] 0.0
          %386 = vst [vmem:[#allocation2 + $0x78] sm:$0xff] 0.0
        $region52: #{tpu_custom_call.1} parent=39 // pred_fallthru
          _
        %s387 = smul.u32 %s30, 128
        %s388 = scalar_lea.vmem %s289, %s387 [#allocation3]
        %v389 = vld [vmem:[%s388] sm:$0xff]
        %v390 = vld [vmem:[%s388 + $0x8] sm:$0xff]
        %v391 = vld [vmem:[%s388 + $0x10] sm:$0xff]
        %v392 = vld [vmem:[%s388 + $0x18] sm:$0xff]
        %v393 = vld [vmem:[%s388 + $0x20] sm:$0xff]
        %v394 = vld [vmem:[%s388 + $0x28] sm:$0xff]
        %v395 = vld [vmem:[%s388 + $0x30] sm:$0xff]
        %v396 = vld [vmem:[%s388 + $0x38] sm:$0xff]
        %v397 = vld [vmem:[%s388 + $0x40] sm:$0xff]
        %v398 = vld [vmem:[%s388 + $0x48] sm:$0xff]
        %v399 = vld [vmem:[%s388 + $0x50] sm:$0xff]
        %v400 = vld [vmem:[%s388 + $0x58] sm:$0xff]
        %v401 = vld [vmem:[%s388 + $0x60] sm:$0xff]
        %v402 = vld [vmem:[%s388 + $0x68] sm:$0xff]
        %v403 = vld [vmem:[%s388 + $0x70] sm:$0xff]
        %v404 = vld [vmem:[%s388 + $0x78] sm:$0xff]
        %v405 = vld [vmem:[#allocation2] sm:$0xff]
        %v406 = vld [vmem:[#allocation2 + $0x8] sm:$0xff]
        %v407 = vld [vmem:[#allocation2 + $0x10] sm:$0xff]
        %v408 = vld [vmem:[#allocation2 + $0x18] sm:$0xff]
        %v409 = vld [vmem:[#allocation2 + $0x20] sm:$0xff]
        %v410 = vld [vmem:[#allocation2 + $0x28] sm:$0xff]
        %v411 = vld [vmem:[#allocation2 + $0x30] sm:$0xff]
        %v412 = vld [vmem:[#allocation2 + $0x38] sm:$0xff]
        %v413 = vld [vmem:[#allocation2 + $0x40] sm:$0xff]
        %v414 = vld [vmem:[#allocation2 + $0x48] sm:$0xff]
        %v415 = vld [vmem:[#allocation2 + $0x50] sm:$0xff]
        %v416 = vld [vmem:[#allocation2 + $0x58] sm:$0xff]
        %v417 = vld [vmem:[#allocation2 + $0x60] sm:$0xff]
        %v418 = vld [vmem:[#allocation2 + $0x68] sm:$0xff]
        %v419 = vld [vmem:[#allocation2 + $0x70] sm:$0xff]
        %v420 = vld [vmem:[#allocation2 + $0x78] sm:$0xff]
        %v421 = vld [vmem:[%s354] sm:$0xff]
        %v422 = vld [vmem:[%s354 + $0x8] sm:$0xff]
        %v423 = vld [vmem:[%s354 + $0x10] sm:$0xff]
        %v424 = vld [vmem:[%s354 + $0x18] sm:$0xff]
        %v425 = vld [vmem:[%s354 + $0x20] sm:$0xff]
        %v426 = vld [vmem:[%s354 + $0x28] sm:$0xff]
        %v427 = vld [vmem:[%s354 + $0x30] sm:$0xff]
        %v428 = vld [vmem:[%s354 + $0x38] sm:$0xff]
        %v429 = vld [vmem:[%s354 + $0x40] sm:$0xff]
        %v430 = vld [vmem:[%s354 + $0x48] sm:$0xff]
        %v431 = vld [vmem:[%s354 + $0x50] sm:$0xff]
        %v432 = vld [vmem:[%s354 + $0x58] sm:$0xff]
        %v433 = vld [vmem:[%s354 + $0x60] sm:$0xff]
        %v434 = vld [vmem:[%s354 + $0x68] sm:$0xff]
        %v435 = vld [vmem:[%s354 + $0x70] sm:$0xff]
        %v436 = vld [vmem:[%s354 + $0x78] sm:$0xff]
        %437 = vmatpush.msra.mxu0 %v404
        %438 = vmatpush.msra.mxu0 %v403
        %439 = vmatpush.msra.mxu0 %v402
        %440 = vmatpush.msra.mxu0 %v401
        %441 = vmatpush.msra.mxu0 %v400
        %442 = vmatpush.msra.mxu0 %v399
        %443 = vmatpush.msra.mxu0 %v398
        %444 = vmatpush.msra.mxu0 %v397
        %445 = vmatpush.msra.mxu0 %v396
        %446 = vmatpush.msra.mxu0 %v395
        %447 = vmatpush.msra.mxu0 %v394
        %448 = vmatpush.msra.mxu0 %v393
        %449 = vmatpush.msra.mxu0 %v392
        %450 = vmatpush.msra.mxu0 %v391
        %451 = vmatpush.msra.mxu0 %v390
        %452 = vmatpush.msra.mxu0 %v389
        %453 = vmatmul.f32.gmra.mxu0 %v421
        %v454 = vpop.f32.mrf.mxu0
        %v455 = vadd.f32 0.0, %v454
        %456 = vmatmul.f32.gmra.mxu0 %v422
        %v457 = vpop.f32.mrf.mxu0
        %v458 = vadd.f32 0.0, %v457
        %459 = vmatmul.f32.gmra.mxu0 %v423
        %v460 = vpop.f32.mrf.mxu0
        %v461 = vadd.f32 0.0, %v460
        %462 = vmatmul.f32.gmra.mxu0 %v424
        %v463 = vpop.f32.mrf.mxu0
        %v464 = vadd.f32 0.0, %v463
        %465 = vmatmul.f32.gmra.mxu0 %v425
        %v466 = vpop.f32.mrf.mxu0
        %v467 = vadd.f32 0.0, %v466
        %468 = vmatmul.f32.gmra.mxu0 %v426
        %v469 = vpop.f32.mrf.mxu0
        %v470 = vadd.f32 0.0, %v469
        %471 = vmatmul.f32.gmra.mxu0 %v427
        %v472 = vpop.f32.mrf.mxu0
        %v473 = vadd.f32 0.0, %v472
        %474 = vmatmul.f32.gmra.mxu0 %v428
        %v475 = vpop.f32.mrf.mxu0
        %v476 = vadd.f32 0.0, %v475
        %477 = vmatmul.f32.gmra.mxu0 %v429
        %v478 = vpop.f32.mrf.mxu0
        %v479 = vadd.f32 0.0, %v478
        %480 = vmatmul.f32.gmra.mxu0 %v430
        %v481 = vpop.f32.mrf.mxu0
        %v482 = vadd.f32 0.0, %v481
        %483 = vmatmul.f32.gmra.mxu0 %v431
        %v484 = vpop.f32.mrf.mxu0
        %v485 = vadd.f32 0.0, %v484
        %486 = vmatmul.f32.gmra.mxu0 %v432
        %v487 = vpop.f32.mrf.mxu0
        %v488 = vadd.f32 0.0, %v487
        %489 = vmatmul.f32.gmra.mxu0 %v433
        %v490 = vpop.f32.mrf.mxu0
        %v491 = vadd.f32 0.0, %v490
        %492 = vmatmul.f32.gmra.mxu0 %v434
        %v493 = vpop.f32.mrf.mxu0
        %v494 = vadd.f32 0.0, %v493
        %495 = vmatmul.f32.gmra.mxu0 %v435
        %v496 = vpop.f32.mrf.mxu0
        %v497 = vadd.f32 0.0, %v496
        %498 = vmatmul.f32.gmra.mxu0 %v436
        %v499 = vpop.f32.mrf.mxu0
        %v500 = vadd.f32 0.0, %v499
        %501 = vdwg.mxu0
        %v502 = vadd.f32 %v405, %v455
        %v503 = vadd.f32 %v406, %v458
        %v504 = vadd.f32 %v407, %v461
        %v505 = vadd.f32 %v408, %v464
        %v506 = vadd.f32 %v409, %v467
        %v507 = vadd.f32 %v410, %v470
        %v508 = vadd.f32 %v411, %v473
        %v509 = vadd.f32 %v412, %v476
        %v510 = vadd.f32 %v413, %v479
        %v511 = vadd.f32 %v414, %v482
        %v512 = vadd.f32 %v415, %v485
        %v513 = vadd.f32 %v416, %v488
        %v514 = vadd.f32 %v417, %v491
        %v515 = vadd.f32 %v418, %v494
        %v516 = vadd.f32 %v419, %v497
        %v517 = vadd.f32 %v420, %v500
        %518 = vst [vmem:[#allocation2] sm:$0xff] %v502
        %519 = vst [vmem:[#allocation2 + $0x8] sm:$0xff] %v503
        %520 = vst [vmem:[#allocation2 + $0x10] sm:$0xff] %v504
        %521 = vst [vmem:[#allocation2 + $0x18] sm:$0xff] %v505
        %522 = vst [vmem:[#allocation2 + $0x20] sm:$0xff] %v506
        %523 = vst [vmem:[#allocation2 + $0x28] sm:$0xff] %v507
        %524 = vst [vmem:[#allocation2 + $0x30] sm:$0xff] %v508
        %525 = vst [vmem:[#allocation2 + $0x38] sm:$0xff] %v509
        %526 = vst [vmem:[#allocation2 + $0x40] sm:$0xff] %v510
        %527 = vst [vmem:[#allocation2 + $0x48] sm:$0xff] %v511
        %528 = vst [vmem:[#allocation2 + $0x50] sm:$0xff] %v512
        %529 = vst [vmem:[#allocation2 + $0x58] sm:$0xff] %v513
        %530 = vst [vmem:[#allocation2 + $0x60] sm:$0xff] %v514
        %531 = vst [vmem:[#allocation2 + $0x68] sm:$0xff] %v515
        %532 = vst [vmem:[#allocation2 + $0x70] sm:$0xff] %v516
        %533 = vst [vmem:[#allocation2 + $0x78] sm:$0xff] %v517
        %p534 = scmp.eq.s32.totalorder %s30, %s29
        // Predicated region
        $region53: #{tpu_custom_call.1} parent=39 // pred_check
          %p535 = pneg %p534
        $region54: #{tpu_custom_call.1} parent=39 // pred_check_branch
          %537 = sbr.rel (%p535) target = $region56
        $region55: #{tpu_custom_call.1} parent=39 // pred_region
          %v538 = vld [vmem:[#allocation2] sm:$0xff]
          %v539 = vld [vmem:[#allocation2 + $0x8] sm:$0xff]
          %v540 = vld [vmem:[#allocation2 + $0x10] sm:$0xff]
          %v541 = vld [vmem:[#allocation2 + $0x18] sm:$0xff]
          %v542 = vld [vmem:[#allocation2 + $0x20] sm:$0xff]
          %v543 = vld [vmem:[#allocation2 + $0x28] sm:$0xff]
          %v544 = vld [vmem:[#allocation2 + $0x30] sm:$0xff]
          %v545 = vld [vmem:[#allocation2 + $0x38] sm:$0xff]
          %v546 = vld [vmem:[#allocation2 + $0x40] sm:$0xff]
          %v547 = vld [vmem:[#allocation2 + $0x48] sm:$0xff]
          %v548 = vld [vmem:[#allocation2 + $0x50] sm:$0xff]
          %v549 = vld [vmem:[#allocation2 + $0x58] sm:$0xff]
          %v550 = vld [vmem:[#allocation2 + $0x60] sm:$0xff]
          %v551 = vld [vmem:[#allocation2 + $0x68] sm:$0xff]
          %v552 = vld [vmem:[#allocation2 + $0x70] sm:$0xff]
          %v553 = vld [vmem:[#allocation2 + $0x78] sm:$0xff]
          %v554 = vadd.f32 %v538, %v389
          %v555 = vadd.f32 %v539, %v390
          %v556 = vadd.f32 %v540, %v391
          %v557 = vadd.f32 %v541, %v392
          %v558 = vadd.f32 %v542, %v393
          %v559 = vadd.f32 %v543, %v394
          %v560 = vadd.f32 %v544, %v395
          %v561 = vadd.f32 %v545, %v396
          %v562 = vadd.f32 %v546, %v397
          %v563 = vadd.f32 %v547, %v398
          %v564 = vadd.f32 %v548, %v399
          %v565 = vadd.f32 %v549, %v400
          %v566 = vadd.f32 %v550, %v401
          %v567 = vadd.f32 %v551, %v402
          %v568 = vadd.f32 %v552, %v403
          %v569 = vadd.f32 %v553, %v404
          %570 = vst [vmem:[#allocation2] sm:$0xff] %v554
          %571 = vst [vmem:[#allocation2 + $0x8] sm:$0xff] %v555
          %572 = vst [vmem:[#allocation2 + $0x10] sm:$0xff] %v556
          %573 = vst [vmem:[#allocation2 + $0x18] sm:$0xff] %v557
          %574 = vst [vmem:[#allocation2 + $0x20] sm:$0xff] %v558
          %575 = vst [vmem:[#allocation2 + $0x28] sm:$0xff] %v559
          %576 = vst [vmem:[#allocation2 + $0x30] sm:$0xff] %v560
          %577 = vst [vmem:[#allocation2 + $0x38] sm:$0xff] %v561
          %578 = vst [vmem:[#allocation2 + $0x40] sm:$0xff] %v562
          %579 = vst [vmem:[#allocation2 + $0x48] sm:$0xff] %v563
          %580 = vst [vmem:[#allocation2 + $0x50] sm:$0xff] %v564
          %581 = vst [vmem:[#allocation2 + $0x58] sm:$0xff] %v565
          %582 = vst [vmem:[#allocation2 + $0x60] sm:$0xff] %v566
          %583 = vst [vmem:[#allocation2 + $0x68] sm:$0xff] %v567
          %584 = vst [vmem:[#allocation2 + $0x70] sm:$0xff] %v568
          %585 = vst [vmem:[#allocation2 + $0x78] sm:$0xff] %v569
        $region56: #{tpu_custom_call.1} parent=39 // pred_fallthru
          _
        // Predicated region
        $region57: #{tpu_custom_call.1} parent=39 // pred_check
          %p586 = pneg %p367
        $region58: #{tpu_custom_call.1} parent=39 // pred_check_branch
          %588 = sbr.rel (%p586) target = $region60
        $region59: #{tpu_custom_call.1} parent=39 // pred_region
          %v589 = vld [vmem:[#allocation2] sm:$0xff]
          %v590 = vld [vmem:[#allocation2 + $0x8] sm:$0xff]
          %v591 = vld [vmem:[#allocation2 + $0x10] sm:$0xff]
          %v592 = vld [vmem:[#allocation2 + $0x18] sm:$0xff]
          %v593 = vld [vmem:[#allocation2 + $0x20] sm:$0xff]
          %v594 = vld [vmem:[#allocation2 + $0x28] sm:$0xff]
          %v595 = vld [vmem:[#allocation2 + $0x30] sm:$0xff]
          %v596 = vld [vmem:[#allocation2 + $0x38] sm:$0xff]
          %v597 = vld [vmem:[#allocation2 + $0x40] sm:$0xff]
          %v598 = vld [vmem:[#allocation2 + $0x48] sm:$0xff]
          %v599 = vld [vmem:[#allocation2 + $0x50] sm:$0xff]
          %v600 = vld [vmem:[#allocation2 + $0x58] sm:$0xff]
          %v601 = vld [vmem:[#allocation2 + $0x60] sm:$0xff]
          %v602 = vld [vmem:[#allocation2 + $0x68] sm:$0xff]
          %v603 = vld [vmem:[#allocation2 + $0x70] sm:$0xff]
          %v604 = vld [vmem:[#allocation2 + $0x78] sm:$0xff]
          %v605 = vld [vmem:[%s364] sm:$0xff]
          %v606 = vld [vmem:[%s364 + $0x8] sm:$0xff]
          %v607 = vld [vmem:[%s364 + $0x10] sm:$0xff]
          %v608 = vld [vmem:[%s364 + $0x18] sm:$0xff]
          %v609 = vld [vmem:[%s364 + $0x20] sm:$0xff]
          %v610 = vld [vmem:[%s364 + $0x28] sm:$0xff]
          %v611 = vld [vmem:[%s364 + $0x30] sm:$0xff]
          %v612 = vld [vmem:[%s364 + $0x38] sm:$0xff]
          %v613 = vld [vmem:[%s364 + $0x40] sm:$0xff]
          %v614 = vld [vmem:[%s364 + $0x48] sm:$0xff]
          %v615 = vld [vmem:[%s364 + $0x50] sm:$0xff]
          %v616 = vld [vmem:[%s364 + $0x58] sm:$0xff]
          %v617 = vld [vmem:[%s364 + $0x60] sm:$0xff]
          %v618 = vld [vmem:[%s364 + $0x68] sm:$0xff]
          %v619 = vld [vmem:[%s364 + $0x70] sm:$0xff]
          %v620 = vld [vmem:[%s364 + $0x78] sm:$0xff]
          %622 = vset.pattern.permute.xlu0 0
          %623 = vperm.xlu0 %622, %v605
          %v624 = vpop.permute.xlu0 %623
          %627 = vset.pattern.permute.xlu0 0
          %628 = vperm.xlu0 %627, %v606
          %v629 = vpop.permute.xlu0 %628
          %632 = vset.pattern.permute.xlu0 0
          %633 = vperm.xlu0 %632, %v607
          %v634 = vpop.permute.xlu0 %633
          %637 = vset.pattern.permute.xlu0 0
          %638 = vperm.xlu0 %637, %v608
          %v639 = vpop.permute.xlu0 %638
          %642 = vset.pattern.permute.xlu0 0
          %643 = vperm.xlu0 %642, %v609
          %v644 = vpop.permute.xlu0 %643
          %647 = vset.pattern.permute.xlu0 0
          %648 = vperm.xlu0 %647, %v610
          %v649 = vpop.permute.xlu0 %648
          %652 = vset.pattern.permute.xlu0 0
          %653 = vperm.xlu0 %652, %v611
          %v654 = vpop.permute.xlu0 %653
          %657 = vset.pattern.permute.xlu0 0
          %658 = vperm.xlu0 %657, %v612
          %v659 = vpop.permute.xlu0 %658
          %662 = vset.pattern.permute.xlu0 0
          %663 = vperm.xlu0 %662, %v613
          %v664 = vpop.permute.xlu0 %663
          %667 = vset.pattern.permute.xlu0 0
          %668 = vperm.xlu0 %667, %v614
          %v669 = vpop.permute.xlu0 %668
          %672 = vset.pattern.permute.xlu0 0
          %673 = vperm.xlu0 %672, %v615
          %v674 = vpop.permute.xlu0 %673
          %677 = vset.pattern.permute.xlu0 0
          %678 = vperm.xlu0 %677, %v616
          %v679 = vpop.permute.xlu0 %678
          %682 = vset.pattern.permute.xlu0 0
          %683 = vperm.xlu0 %682, %v617
          %v684 = vpop.permute.xlu0 %683
          %687 = vset.pattern.permute.xlu0 0
          %688 = vperm.xlu0 %687, %v618
          %v689 = vpop.permute.xlu0 %688
          %692 = vset.pattern.permute.xlu0 0
          %693 = vperm.xlu0 %692, %v619
          %v694 = vpop.permute.xlu0 %693
          %697 = vset.pattern.permute.xlu0 0
          %698 = vperm.xlu0 %697, %v620
          %v699 = vpop.permute.xlu0 %698
          %v701 = vmul.f32 %v624, %v589
          %v702 = vmul.f32 %v629, %v590
          %v703 = vmul.f32 %v634, %v591
          %v704 = vmul.f32 %v639, %v592
          %v705 = vmul.f32 %v644, %v593
          %v706 = vmul.f32 %v649, %v594
          %v707 = vmul.f32 %v654, %v595
          %v708 = vmul.f32 %v659, %v596
          %v709 = vmul.f32 %v664, %v597
          %v710 = vmul.f32 %v669, %v598
          %v711 = vmul.f32 %v674, %v599
          %v712 = vmul.f32 %v679, %v600
          %v713 = vmul.f32 %v684, %v601
          %v714 = vmul.f32 %v689, %v602
          %v715 = vmul.f32 %v694, %v603
          %v716 = vmul.f32 %v699, %v604
          %v717 = vld [vmem:[#allocation6] sm:$0xff]
          %v718 = vld [vmem:[#allocation6 + $0x8] sm:$0xff]
          %v719 = vld [vmem:[#allocation6 + $0x10] sm:$0xff]
          %v720 = vld [vmem:[#allocation6 + $0x18] sm:$0xff]
          %v721 = vld [vmem:[#allocation6 + $0x20] sm:$0xff]
          %v722 = vld [vmem:[#allocation6 + $0x28] sm:$0xff]
          %v723 = vld [vmem:[#allocation6 + $0x30] sm:$0xff]
          %v724 = vld [vmem:[#allocation6 + $0x38] sm:$0xff]
          %v725 = vld [vmem:[#allocation6 + $0x40] sm:$0xff]
          %v726 = vld [vmem:[#allocation6 + $0x48] sm:$0xff]
          %v727 = vld [vmem:[#allocation6 + $0x50] sm:$0xff]
          %v728 = vld [vmem:[#allocation6 + $0x58] sm:$0xff]
          %v729 = vld [vmem:[#allocation6 + $0x60] sm:$0xff]
          %v730 = vld [vmem:[#allocation6 + $0x68] sm:$0xff]
          %v731 = vld [vmem:[#allocation6 + $0x70] sm:$0xff]
          %v732 = vld [vmem:[#allocation6 + $0x78] sm:$0xff]
          %v733 = vld [vmem:[%s4] sm:$0x1]
          %v735 = vperm.slane %v733, 0
          %737 = vmatpush.msra.mxu0 %v732
          %738 = vmatpush.msra.mxu0 %v731
          %739 = vmatpush.msra.mxu0 %v730
          %740 = vmatpush.msra.mxu0 %v729
          %741 = vmatpush.msra.mxu0 %v728
          %742 = vmatpush.msra.mxu0 %v727
          %743 = vmatpush.msra.mxu0 %v726
          %744 = vmatpush.msra.mxu0 %v725
          %745 = vmatpush.msra.mxu0 %v724
          %746 = vmatpush.msra.mxu0 %v723
          %747 = vmatpush.msra.mxu0 %v722
          %748 = vmatpush.msra.mxu0 %v721
          %749 = vmatpush.msra.mxu0 %v720
          %750 = vmatpush.msra.mxu0 %v719
          %751 = vmatpush.msra.mxu0 %v718
          %752 = vmatpush.msra.mxu0 %v717
          %753 = vmatmul.f32.gmra.mxu0 %v701
          %v754 = vpop.f32.mrf.mxu0
          %v755 = vadd.f32 %v735, %v754
          %756 = vmatmul.f32.gmra.mxu0 %v702
          %v757 = vpop.f32.mrf.mxu0
          %v758 = vadd.f32 %v735, %v757
          %759 = vmatmul.f32.gmra.mxu0 %v703
          %v760 = vpop.f32.mrf.mxu0
          %v761 = vadd.f32 %v735, %v760
          %762 = vmatmul.f32.gmra.mxu0 %v704
          %v763 = vpop.f32.mrf.mxu0
          %v764 = vadd.f32 %v735, %v763
          %765 = vmatmul.f32.gmra.mxu0 %v705
          %v766 = vpop.f32.mrf.mxu0
          %v767 = vadd.f32 %v735, %v766
          %768 = vmatmul.f32.gmra.mxu0 %v706
          %v769 = vpop.f32.mrf.mxu0
          %v770 = vadd.f32 %v735, %v769
          %771 = vmatmul.f32.gmra.mxu0 %v707
          %v772 = vpop.f32.mrf.mxu0
          %v773 = vadd.f32 %v735, %v772
          %774 = vmatmul.f32.gmra.mxu0 %v708
          %v775 = vpop.f32.mrf.mxu0
          %v776 = vadd.f32 %v735, %v775
          %777 = vmatmul.f32.gmra.mxu0 %v709
          %v778 = vpop.f32.mrf.mxu0
          %v779 = vadd.f32 %v735, %v778
          %780 = vmatmul.f32.gmra.mxu0 %v710
          %v781 = vpop.f32.mrf.mxu0
          %v782 = vadd.f32 %v735, %v781
          %783 = vmatmul.f32.gmra.mxu0 %v711
          %v784 = vpop.f32.mrf.mxu0
          %v785 = vadd.f32 %v735, %v784
          %786 = vmatmul.f32.gmra.mxu0 %v712
          %v787 = vpop.f32.mrf.mxu0
          %v788 = vadd.f32 %v735, %v787
          %789 = vmatmul.f32.gmra.mxu0 %v713
          %v790 = vpop.f32.mrf.mxu0
          %v791 = vadd.f32 %v735, %v790
          %792 = vmatmul.f32.gmra.mxu0 %v714
          %v793 = vpop.f32.mrf.mxu0
          %v794 = vadd.f32 %v735, %v793
          %795 = vmatmul.f32.gmra.mxu0 %v715
          %v796 = vpop.f32.mrf.mxu0
          %v797 = vadd.f32 %v735, %v796
          %798 = vmatmul.f32.gmra.mxu0 %v716
          %v799 = vpop.f32.mrf.mxu0
          %v800 = vadd.f32 %v735, %v799
          %801 = vdwg.mxu0
          %802 = vst [vmem:[%s342] sm:$0xff] %v755
          %803 = vst [vmem:[%s342 + $0x8] sm:$0xff] %v758
          %804 = vst [vmem:[%s342 + $0x10] sm:$0xff] %v761
          %805 = vst [vmem:[%s342 + $0x18] sm:$0xff] %v764
          %806 = vst [vmem:[%s342 + $0x20] sm:$0xff] %v767
          %807 = vst [vmem:[%s342 + $0x28] sm:$0xff] %v770
          %808 = vst [vmem:[%s342 + $0x30] sm:$0xff] %v773
          %809 = vst [vmem:[%s342 + $0x38] sm:$0xff] %v776
          %810 = vst [vmem:[%s342 + $0x40] sm:$0xff] %v779
          %811 = vst [vmem:[%s342 + $0x48] sm:$0xff] %v782
          %812 = vst [vmem:[%s342 + $0x50] sm:$0xff] %v785
          %813 = vst [vmem:[%s342 + $0x58] sm:$0xff] %v788
          %814 = vst [vmem:[%s342 + $0x60] sm:$0xff] %v791
          %815 = vst [vmem:[%s342 + $0x68] sm:$0xff] %v794
          %816 = vst [vmem:[%s342 + $0x70] sm:$0xff] %v797
          %817 = vst [vmem:[%s342 + $0x78] sm:$0xff] %v800
        $region60: #{tpu_custom_call.1} parent=39 // pred_fallthru
          _
        %s818 = sand.u32 %s178, 1
        %s819 = scalar_lea.sflag [#allocation5], %s818
        %s820 = sand.u32 %s178, 1
        %s821 = smul.addr %s820, 128
        %s822 = scalar_lea.vmem [#allocation8], %s821
        // Predicated region
        $region61: #{tpu_custom_call.1} parent=39 // pred_check
          %p823 = pneg %p188
        $region62: #{tpu_custom_call.1} parent=39 // pred_check_branch
          %825 = sbr.rel (%p823) target = $region64
        $region63: #{tpu_custom_call.1} parent=39 // pred_region
          %s826 = smul.u32 16, %s29
          %828 = vsyncadd %s819, 0
          %s829 = smul.addr %s28, 16
          %s830 = sadd.s32 %s826, %s829
          %s831 = smul.addr %s830, 8
          %s832 = scalar_lea.hbm %s5, %s831
          %s833 = sshll.u32 %s822, 4
          %s834 = int_to_ptr.vmem [resolvable:$true] %s833
          %s835 = sshll.u32 %s832, 4
          %s836 = int_to_ptr.hbm [resolvable:$true] %s835
          %841 = dma.vmem_to_hbm [thread:$0]  %s834, 2048, %s836, %s819, 128, 128, 8
        $region64: #{tpu_custom_call.1} parent=39 // pred_fallthru
          _
      $region40: #{tpu_custom_call.1} parent=5 // pred_fallthru
        _
      %p842 = scmp.le.s32.totalorder 2, %s18
      // Predicated region
      $region65: #{tpu_custom_call.1} parent=5 // pred_check
        %p843 = pneg %p842
      $region66: #{tpu_custom_call.1} parent=5 // pred_check_branch
        %845 = sbr.rel (%p843) target = $region68
      $region67: #{tpu_custom_call.1} parent=5 // pred_region
        %s846 = ssub.s32 %s18, 2
        // Predicated region
        $region69: #{tpu_custom_call.1} parent=67 // pred_check
          %p847 = pneg %p194
        $region70: #{tpu_custom_call.1} parent=67 // pred_check_branch
          %849 = sbr.rel (%p847) target = $region72
        $region71: #{tpu_custom_call.1} parent=67 // pred_region
          %s850 = sand.u32 %s179, 1
          %s851 = scalar_lea.sflag [#allocation5], %s850
          %s852 = sand.u32 %s179, 1
          %s853 = smul.addr %s852, 128
          %s854 = scalar_lea.vmem [#allocation8], %s853
          %856 = dma.done %s851, 2048
        $region72: #{tpu_custom_call.1} parent=67 // pred_fallthru
          _
      $region68: #{tpu_custom_call.1} parent=5 // pred_fallthru
        _
    $region6: #{tpu_custom_call.1} parent=1 // loop_footer
      %s22 = sadd.s32 1, %s18
    $region7: #{tpu_custom_call.1} parent=1 // loop_footer_branch
      %17 = sbr.rel target = $region3
    $region8: #{tpu_custom_call.1} parent=1 // loop_exit
      _
    %857 = vsyncpa [#allocation4], 1
    %s858 = scalar_lea.sflag [#allocation4], 1
    %859 = vsyncpa %s858, 1
    %860 = vsyncpa [#allocation7], 1
    %861 = vsyncpa [#allocation5], 1
    %s862 = scalar_lea.sflag [#allocation5], 1
    %863 = vsyncpa %s862, 1

</llo_original>
